<compile_context>
chip_gen: v6e
topology: v6e:2x2x1
jax: 0.10.0
libtpu: 0.0.40
codegen_flags: <defaults>
</compile_context>

<pallas_src>
import jax
import jax.numpy as jnp
from jax.experimental import pallas as pl
from jax.experimental.pallas import tpu as pltpu


# ---------------------------------------------------------------------------
# Kernel 1: support = X @ W   (bf16 MXU matmul, f32 accumulate, bf16 store)
# ---------------------------------------------------------------------------
def support_kernel(x_ref, w_ref, o_ref):
    o_ref[...] = jnp.dot(
        x_ref[...], w_ref[...], preferred_element_type=jnp.float32
    ).astype(o_ref.dtype)


# ---------------------------------------------------------------------------
# Kernel 2: out = relu((A @ support) * scale + shift)
# A is streamed as int8 (or bf16) tiles and widened to bf16 just before the dot.
# ---------------------------------------------------------------------------
def gcn_agg_kernel(adj_ref, support_ref, scale_ref, shift_ref, o_ref, acc_ref):
    k = pl.program_id(1)

    @pl.when(k == 0)
    def _():
        acc_ref[...] = jnp.zeros_like(acc_ref)

    # int8 {0,1} -> f32 -> bf16 is exact; the widen is cheap VPU work hidden
    # under the (dominant) adjacency DMA.
    adj = adj_ref[...].astype(jnp.float32).astype(jnp.bfloat16)
    acc_ref[...] += jnp.dot(adj, support_ref[...],
                            preferred_element_type=jnp.float32)

    @pl.when(k == pl.num_programs(1) - 1)
    def _():
        # folded GCN bias + eval-mode BatchNorm affine, then ReLU
        # (Dropout is identity in eval mode).
        h = acc_ref[...] * scale_ref[...] + shift_ref[...]
        o_ref[...] = jnp.maximum(h, 0.0).astype(o_ref.dtype)


def _round_up(x, m):
    return (x + m - 1) // m * m


def gcn_block(x, adj, w, b, gamma=None, beta=None, running_mean=None,
              running_var=None, eps=1e-5, do_bn=True, adj_is_binary=True,
              block_m=512, block_k=2048):
    """Eval-mode GCNBlock forward: relu(BN(adj @ (x @ w) + b)); dropout = identity.

    `adj` is a dense adjacency. For best performance pass it already as int8
    (values exactly representable, e.g. {0,1}) with dimensions aligned to the
    block sizes so no wrapper-side pad/cast pass over it is needed.
    """
    n, f_in = x.shape
    f_out = w.shape[1]
    f32 = jnp.float32
    bf16 = jnp.bfloat16

    # ---- fold GCN bias + eval BN into a single per-feature affine ----------
    if do_bn:
        scale = gamma.astype(f32) / jnp.sqrt(running_var.astype(f32) + eps)
        shift = (b.astype(f32) * scale + beta.astype(f32)
                 - running_mean.astype(f32) * scale)
    else:
        scale = jnp.ones((f_out,), f32)
        shift = b.astype(f32)

    # ---- lane/MXU-friendly padded extents -----------------------------------
    f_in_p = _round_up(f_in, 128)
    f_out_p = _round_up(f_out, 128)
    n128 = _round_up(n, 128)

    # >=2 row blocks (balances v7x's two TensorCores on the "parallel" axis);
    # row/reduction blocks are multiples of 128 for (8,128)/MXU tiling.
    n_blocks_m = max(2 if n128 >= 256 else 1, -(-n128 // block_m))
    bm = _round_up(-(-n128 // n_blocks_m), 128)
    n_m = bm * n_blocks_m
    bk = min(block_k, n128)
    n_k = _round_up(n, bk)

    # ---- adjacency: keep caller's compact dtype, pad only if ragged ---------
    if adj_is_binary:
        if adj.dtype != jnp.int8:
            adj = adj.astype(jnp.int8)      # exact for {0,1}; halves HBM bytes
    elif adj.dtype != bf16:
        adj = adj.astype(bf16)              # weighted adjacency path
    if adj.shape != (n_m, n_k):
        adj = jnp.pad(adj, ((0, n_m - n), (0, n_k - n)))

    # ---- features / weights / affine (tiny next to the adjacency) -----------
    x_p = jnp.zeros((n_k, f_in_p), bf16).at[:n, :f_in].set(x.astype(bf16))
    w_p = jnp.zeros((f_in_p, f_out_p), bf16).at[:f_in, :f_out].set(w.astype(bf16))
    scale_p = jnp.zeros((1, f_out_p), f32).at[0, :f_out].set(scale)
    shift_p = jnp.zeros((1, f_out_p), f32).at[0, :f_out].set(shift)

    # ---- kernel 1: support = X @ W, computed once (hoisted out of row grid) -
    support = pl.pallas_call(
        support_kernel,
        out_shape=jax.ShapeDtypeStruct((n_k, f_out_p), bf16),
        grid=(n_k // bk,),
        in_specs=[
            pl.BlockSpec((bk, f_in_p), lambda i: (i, 0)),
            pl.BlockSpec((f_in_p, f_out_p), lambda i: (0, 0)),
        ],
        out_specs=pl.BlockSpec((bk, f_out_p), lambda i: (i, 0)),
        compiler_params=pltpu.CompilerParams(dimension_semantics=("parallel",)),
    )(x_p, w_p)

    # ---- kernel 2: tiled aggregation + fused bias/BN/ReLU epilogue ----------
    out_p = pl.pallas_call(
        gcn_agg_kernel,
        out_shape=jax.ShapeDtypeStruct((n_m, f_out_p), x.dtype),
        grid=(n_m // bm, n_k // bk),
        in_specs=[
            pl.BlockSpec((bm, bk), lambda i, k: (i, k)),        # adjacency tile (int8)
            pl.BlockSpec((bk, f_out_p), lambda i, k: (k, 0)),   # support k-block (bf16)
            pl.BlockSpec((1, f_out_p), lambda i, k: (0, 0)),    # folded BN scale
            pl.BlockSpec((1, f_out_p), lambda i, k: (0, 0)),    # folded bias+BN shift
        ],
        out_specs=pl.BlockSpec((bm, f_out_p), lambda i, k: (i, 0)),
        scratch_shapes=[pltpu.VMEM((bm, f_out_p), jnp.float32)],
        compiler_params=pltpu.CompilerParams(
            dimension_semantics=("parallel", "arbitrary")),
    )(adj, support, scale_p, shift_p)

    return out_p[:n, :f_out]


def reference_forward(x, adj, w, b, gamma, beta, mean, var, eps=1e-5):
    h = adj @ (x @ w) + b
    h = (h - mean) / jnp.sqrt(var + eps) * gamma + beta
    return jnp.maximum(h, 0.0)


def reference_forward_bf16(x, adj, w, b, gamma, beta, mean, var, eps=1e-5):
    # Same dtype policy as the kernels: bf16 matmul operands, f32 accumulation.
    support = jnp.dot(x.astype(jnp.bfloat16), w.astype(jnp.bfloat16),
                      preferred_element_type=jnp.float32).astype(jnp.bfloat16)
    agg = jnp.dot(adj.astype(jnp.bfloat16), support,
                  preferred_element_type=jnp.float32)
    scale = gamma / jnp.sqrt(var + eps)
    shift = b * scale + beta - mean * scale
    return jnp.maximum(agg * scale + shift, 0.0)


if __name__ == "__main__":
    key = jax.random.PRNGKey(0)
    N, F_IN, F_OUT = 600, 8, 32   # small graph; exercises a (2, 1) tile grid + ragged padding
    NNZ = 3000

    k_x, k_es, k_ed, k_w, k_b, k_g, k_be, k_rm = jax.random.split(key, 8)

    # Node features
    x = jax.random.normal(k_x, (N, F_IN), dtype=jnp.float32)

    # Deterministic COO adjacency, densified directly as int8 ({0,1} exact) so the
    # kernel's dominant DMA stream is 1 byte/entry and no wrapper cast is needed.
    src = jax.random.randint(k_es, (NNZ,), 0, N)
    dst = jax.random.randint(k_ed, (NNZ,), 0, N)
    adj_i8 = jnp.zeros((N, N), dtype=jnp.int8).at[src, dst].set(1)
    adj_i8 = jnp.maximum(adj_i8, jnp.eye(N, dtype=jnp.int8))   # self loops

    # SpatialGCNLayer parameters
    w = jax.random.normal(k_w, (F_IN, F_OUT), dtype=jnp.float32) * 0.1
    b = jax.random.normal(k_b, (F_OUT,), dtype=jnp.float32) * 0.1

    # BatchNorm1d(F_OUT) eval-mode parameters / running stats
    gamma = 1.0 + 0.1 * jax.random.normal(k_g, (F_OUT,), dtype=jnp.float32)
    beta = 0.1 * jax.random.normal(k_be, (F_OUT,), dtype=jnp.float32)
    running_mean = 0.1 * jax.random.normal(k_rm, (F_OUT,), dtype=jnp.float32)
    running_var = jnp.ones((F_OUT,), dtype=jnp.float32)

    out = gcn_block(x, adj_i8, w, b, gamma, beta, running_mean, running_var)
    out = jax.block_until_ready(out)
    assert out.shape == (N, F_OUT)

    adj_f32 = adj_i8.astype(jnp.float32)

    # Tight check vs a reference using the kernel's exact dtype policy.
    ref_bf16 = reference_forward_bf16(x, adj_f32, w, b, gamma, beta,
                                      running_mean, running_var)
    assert jnp.allclose(out, ref_bf16, atol=2e-3, rtol=2e-3), \
        "mismatch vs bf16-matched reference"

    # Loose sanity check vs the full-precision math of the PyTorch module.
    ref_f32 = reference_forward(x, adj_f32, w, b, gamma, beta,
                                running_mean, running_var)
    assert jnp.allclose(out, ref_f32, atol=1e-1, rtol=1e-1), \
        "mismatch vs f32 reference"

    print("KERNEL_OK")
</pallas_src>

<mosaic_0001>
module attributes {stable_mosaic.version = 11 : i64} {
  func.func @support_kernel(%arg0: i32, %arg1: memref<640x128xbf16, #tpu.memory_space<vmem>>, %arg2: memref<128x128xbf16, #tpu.memory_space<vmem>>, %arg3: memref<640x128xbf16, #tpu.memory_space<vmem>>) attributes {dimension_semantics = [#tpu.dimension_semantics<parallel>], iteration_bounds = array<i64: 1>, scalar_prefetch = 0 : i64, scratch_operands = 0 : i64, tpu.core_type = #tpu.core_type<tc>, window_params = [{transform_indices = @transform_0, window_bounds = array<i64: 640, 128>}, {pipeline_mode = #tpu.pipeline_mode<synchronous>, transform_indices = @transform_1, window_bounds = array<i64: 128, 128>}, {transform_indices = @transform_2, window_bounds = array<i64: 640, 128>}]} {
    %c0 = arith.constant 0 : index
    %c0_0 = arith.constant 0 : index
    %0 = vector.load %arg1[%c0, %c0_0] : memref<640x128xbf16, #tpu.memory_space<vmem>>, vector<640x128xbf16>
    %c0_1 = arith.constant 0 : index
    %c0_2 = arith.constant 0 : index
    %1 = vector.load %arg2[%c0_1, %c0_2] : memref<128x128xbf16, #tpu.memory_space<vmem>>, vector<128x128xbf16>
    %cst = arith.constant dense<0.000000e+00> : vector<640x128xf32>
    %2 = tpu.matmul %0, %1, %cst {dimension_numbers = #tpu.dot_dimension_numbers<[1], [0], [0], [1], [0, 0, 1, 1], [], []>} : vector<640x128xbf16>, vector<128x128xbf16>, vector<640x128xf32> -> vector<640x128xf32>
    %3 = arith.truncf %2 : vector<640x128xf32> to vector<640x128xbf16>
    %c0_3 = arith.constant 0 : index
    %c0_4 = arith.constant 0 : index
    %4 = vector.load %arg3[%c0_3, %c0_4] : memref<640x128xbf16, #tpu.memory_space<vmem>>, vector<640x128xbf16>
    tpu.vector_store %arg3[%c0_3, %c0_4], %3 {strides = array<i32>} : memref<640x128xbf16, #tpu.memory_space<vmem>>, vector<640x128xbf16>,
    return
  }
  func.func @transform_0(%arg0: i32) -> (i32, i32) {
    %c0_i32 = arith.constant 0 : i32
    %c0_i32_0 = arith.constant 0 : i32
    return %arg0, %c0_i32 : i32, i32
  }
  func.func @transform_1(%arg0: i32) -> (i32, i32) {
    %c0_i32 = arith.constant 0 : i32
    %c0_i32_0 = arith.constant 0 : i32
    %c0_i32_1 = arith.constant 0 : i32
    return %c0_i32, %c0_i32_0 : i32, i32
  }
  func.func @transform_2(%arg0: i32) -> (i32, i32) {
    %c0_i32 = arith.constant 0 : i32
    %c0_i32_0 = arith.constant 0 : i32
    return %arg0, %c0_i32 : i32, i32
  }
}

</mosaic_0001>

<llo_original>
// kernel: tpu_custom_call.1
$region0: #{tpu_custom_call.1}
  #allocation0 [shape = 'u32[]', space=smem, size = 0x4, offset = 0x4, fixed_abs, tag = 'smem constant byte address 0x4 - core index']
  #allocation1 [shape = 'u32[144,128]{1,0:T(1,128)}', space=vmem, size = 0x12000, scoped, tag = 'internal scratch']
  %s0 = inlined_call_operand.hbm [shape: bf16[640,128], index: 0, kind: input, shape index: {}]
  %s1 = inlined_call_operand.hbm [shape: bf16[128,128], index: 1, kind: input, shape index: {}]
  %s2 = inlined_call_operand.hbm [shape: bf16[640,128], index: 2, kind: output, shape index: {}]
  %s3 = sld [smem:[#allocation0]]
  $region26: #{tpu_custom_call.1} parent=0
    _
  %s5 = ssub.s32 1, %s3
  %s6 = scalar_select 0, %s5, %s3
  $region1: #{tpu_custom_call.1} parent=0
    #allocation2 [shape = 'u8[163840]{0}', space=vmem, size = 0x28000, scoped, tag = 'input window, operand 0, single buffered']
    #allocation3 [shape = 's32[1]{0}', space=sflag, size = 0x4, scoped, tag = 'scoped memory for tpu_custom_call.1']
    #allocation4 [shape = 's32[1]{0}', space=sflag, size = 0x4, scoped, tag = 'scoped memory for tpu_custom_call.1']
    #allocation5 [shape = 'u8[32768]{0}', space=vmem, size = 0x8000, scoped, tag = 'input window, operand 1, single buffered']
    #allocation6 [shape = 's32[1]{0}', space=sflag, size = 0x4, scoped, tag = 'scoped memory for tpu_custom_call.1']
    #allocation7 [shape = 'u8[163840]{0}', space=vmem, size = 0x28000, scoped, tag = 'output window, operand 0, single buffered']
    %7 = vsyncpa [#allocation3], 0
    %8 = vsyncpa [#allocation6], 0
    %9 = vsyncpa [#allocation4], 0
    // Predicated region
    $region2: #{tpu_custom_call.1} parent=1 // pred_check
      _
    $region3: #{tpu_custom_call.1} parent=1 // pred_check_branch
      %11 = sbr.rel (0) target = $region5
    $region4: #{tpu_custom_call.1} parent=1 // pred_region
      %s13 = ssub.s32 5120, 5120
      %14 = vsyncadd [#allocation3], %s13
      %s15 = sshll.u32 [#allocation2], 4
      %s16 = int_to_ptr.vmem [resolvable:$true] %s15
      %21 = dma.hbm_to_vmem [thread:$0]  %s0, 5120, %s16, [#allocation3], 64, 64, 4
    $region5: #{tpu_custom_call.1} parent=1 // pred_fallthru
      _
    // Predicated region
    $region6: #{tpu_custom_call.1} parent=1 // pred_check
      _
    $region7: #{tpu_custom_call.1} parent=1 // pred_check_branch
      %23 = sbr.rel (0) target = $region9
    $region8: #{tpu_custom_call.1} parent=1 // pred_region
      %s25 = ssub.s32 1024, 1024
      %26 = vsyncadd [#allocation6], %s25
      %s27 = sshll.u32 [#allocation5], 4
      %s28 = int_to_ptr.vmem [resolvable:$true] %s27
      %33 = dma.hbm_to_vmem [thread:$0]  %s1, 1024, %s28, [#allocation6], 64, 64, 4
    $region9: #{tpu_custom_call.1} parent=1 // pred_fallthru
      _
    // Predicated region
    $region10: #{tpu_custom_call.1} parent=1 // pred_check
      _
    $region11: #{tpu_custom_call.1} parent=1 // pred_check_branch
      %35 = sbr.rel (0) target = $region13
    $region12: #{tpu_custom_call.1} parent=1 // pred_region
      %36 = dma.done [#allocation3], 5120
    $region13: #{tpu_custom_call.1} parent=1 // pred_fallthru
      _
    // Predicated region
    $region14: #{tpu_custom_call.1} parent=1 // pred_check
      _
    $region15: #{tpu_custom_call.1} parent=1 // pred_check_branch
      %38 = sbr.rel (0) target = $region17
    $region16: #{tpu_custom_call.1} parent=1 // pred_region
      %39 = dma.done [#allocation6], 1024
    $region17: #{tpu_custom_call.1} parent=1 // pred_fallthru
      _
    %v41 = vld [vmem:[#allocation2] sm:$0xf]
    %v42 = vld [vmem:[#allocation2 + $0x4] sm:$0xf]
    %v43 = vld [vmem:[#allocation2 + $0x8] sm:$0xf]
    %v44 = vld [vmem:[#allocation2 + $0xc] sm:$0xf]
    %v45 = vld [vmem:[#allocation2 + $0x10] sm:$0xf]
    %v46 = vld [vmem:[#allocation2 + $0x14] sm:$0xf]
    %v47 = vld [vmem:[#allocation2 + $0x18] sm:$0xf]
    %v48 = vld [vmem:[#allocation2 + $0x1c] sm:$0xf]
    %v49 = vld [vmem:[#allocation2 + $0x20] sm:$0xf]
    %v50 = vld [vmem:[#allocation2 + $0x24] sm:$0xf]
    %v51 = vld [vmem:[#allocation2 + $0x28] sm:$0xf]
    %v52 = vld [vmem:[#allocation2 + $0x2c] sm:$0xf]
    %v53 = vld [vmem:[#allocation2 + $0x30] sm:$0xf]
    %v54 = vld [vmem:[#allocation2 + $0x34] sm:$0xf]
    %v55 = vld [vmem:[#allocation2 + $0x38] sm:$0xf]
    %v56 = vld [vmem:[#allocation2 + $0x3c] sm:$0xf]
    %v57 = vld [vmem:[#allocation2 + $0x40] sm:$0xf]
    %v58 = vld [vmem:[#allocation2 + $0x44] sm:$0xf]
    %v59 = vld [vmem:[#allocation2 + $0x48] sm:$0xf]
    %v60 = vld [vmem:[#allocation2 + $0x4c] sm:$0xf]
    %v61 = vld [vmem:[#allocation2 + $0x50] sm:$0xf]
    %v62 = vld [vmem:[#allocation2 + $0x54] sm:$0xf]
    %v63 = vld [vmem:[#allocation2 + $0x58] sm:$0xf]
    %v64 = vld [vmem:[#allocation2 + $0x5c] sm:$0xf]
    %v65 = vld [vmem:[#allocation2 + $0x60] sm:$0xf]
    %v66 = vld [vmem:[#allocation2 + $0x64] sm:$0xf]
    %v67 = vld [vmem:[#allocation2 + $0x68] sm:$0xf]
    %v68 = vld [vmem:[#allocation2 + $0x6c] sm:$0xf]
    %v69 = vld [vmem:[#allocation2 + $0x70] sm:$0xf]
    %v70 = vld [vmem:[#allocation2 + $0x74] sm:$0xf]
    %v71 = vld [vmem:[#allocation2 + $0x78] sm:$0xf]
    %v72 = vld [vmem:[#allocation2 + $0x7c] sm:$0xf]
    %v73 = vld [vmem:[#allocation2 + $0x80] sm:$0xf]
    %v74 = vld [vmem:[#allocation2 + $0x84] sm:$0xf]
    %v75 = vld [vmem:[#allocation2 + $0x88] sm:$0xf]
    %v76 = vld [vmem:[#allocation2 + $0x8c] sm:$0xf]
    %v77 = vld [vmem:[#allocation2 + $0x90] sm:$0xf]
    %v78 = vld [vmem:[#allocation2 + $0x94] sm:$0xf]
    %v79 = vld [vmem:[#allocation2 + $0x98] sm:$0xf]
    %v80 = vld [vmem:[#allocation2 + $0x9c] sm:$0xf]
    %v81 = vld [vmem:[#allocation2 + $0xa0] sm:$0xf]
    %v82 = vld [vmem:[#allocation2 + $0xa4] sm:$0xf]
    %v83 = vld [vmem:[#allocation2 + $0xa8] sm:$0xf]
    %v84 = vld [vmem:[#allocation2 + $0xac] sm:$0xf]
    %v85 = vld [vmem:[#allocation2 + $0xb0] sm:$0xf]
    %v86 = vld [vmem:[#allocation2 + $0xb4] sm:$0xf]
    %v87 = vld [vmem:[#allocation2 + $0xb8] sm:$0xf]
    %v88 = vld [vmem:[#allocation2 + $0xbc] sm:$0xf]
    %v89 = vld [vmem:[#allocation2 + $0xc0] sm:$0xf]
    %v90 = vld [vmem:[#allocation2 + $0xc4] sm:$0xf]
    %v91 = vld [vmem:[#allocation2 + $0xc8] sm:$0xf]
    %v92 = vld [vmem:[#allocation2 + $0xcc] sm:$0xf]
    %v93 = vld [vmem:[#allocation2 + $0xd0] sm:$0xf]
    %v94 = vld [vmem:[#allocation2 + $0xd4] sm:$0xf]
    %v95 = vld [vmem:[#allocation2 + $0xd8] sm:$0xf]
    %v96 = vld [vmem:[#allocation2 + $0xdc] sm:$0xf]
    %v97 = vld [vmem:[#allocation2 + $0xe0] sm:$0xf]
    %v98 = vld [vmem:[#allocation2 + $0xe4] sm:$0xf]
    %v99 = vld [vmem:[#allocation2 + $0xe8] sm:$0xf]
    %v100 = vld [vmem:[#allocation2 + $0xec] sm:$0xf]
    %v101 = vld [vmem:[#allocation2 + $0xf0] sm:$0xf]
    %v102 = vld [vmem:[#allocation2 + $0xf4] sm:$0xf]
    %v103 = vld [vmem:[#allocation2 + $0xf8] sm:$0xf]
    %v104 = vld [vmem:[#allocation2 + $0xfc] sm:$0xf]
    %v105 = vld [vmem:[#allocation2 + $0x100] sm:$0xf]
    %v106 = vld [vmem:[#allocation2 + $0x104] sm:$0xf]
    %v107 = vld [vmem:[#allocation2 + $0x108] sm:$0xf]
    %v108 = vld [vmem:[#allocation2 + $0x10c] sm:$0xf]
    %v109 = vld [vmem:[#allocation2 + $0x110] sm:$0xf]
    %v110 = vld [vmem:[#allocation2 + $0x114] sm:$0xf]
    %v111 = vld [vmem:[#allocation2 + $0x118] sm:$0xf]
    %v112 = vld [vmem:[#allocation2 + $0x11c] sm:$0xf]
    %v113 = vld [vmem:[#allocation2 + $0x120] sm:$0xf]
    %v114 = vld [vmem:[#allocation2 + $0x124] sm:$0xf]
    %v115 = vld [vmem:[#allocation2 + $0x128] sm:$0xf]
    %v116 = vld [vmem:[#allocation2 + $0x12c] sm:$0xf]
    %v117 = vld [vmem:[#allocation2 + $0x130] sm:$0xf]
    %v118 = vld [vmem:[#allocation2 + $0x134] sm:$0xf]
    %v119 = vld [vmem:[#allocation2 + $0x138] sm:$0xf]
    %v120 = vld [vmem:[#allocation2 + $0x13c] sm:$0xf]
    %v121 = vld [vmem:[#allocation5] sm:$0xf]
    %v122 = vld [vmem:[#allocation5 + $0x4] sm:$0xf]
    %v123 = vld [vmem:[#allocation5 + $0x8] sm:$0xf]
    %v124 = vld [vmem:[#allocation5 + $0xc] sm:$0xf]
    %v125 = vld [vmem:[#allocation5 + $0x10] sm:$0xf]
    %v126 = vld [vmem:[#allocation5 + $0x14] sm:$0xf]
    %v127 = vld [vmem:[#allocation5 + $0x18] sm:$0xf]
    %v128 = vld [vmem:[#allocation5 + $0x1c] sm:$0xf]
    %v129 = vld [vmem:[#allocation5 + $0x20] sm:$0xf]
    %v130 = vld [vmem:[#allocation5 + $0x24] sm:$0xf]
    %v131 = vld [vmem:[#allocation5 + $0x28] sm:$0xf]
    %v132 = vld [vmem:[#allocation5 + $0x2c] sm:$0xf]
    %v133 = vld [vmem:[#allocation5 + $0x30] sm:$0xf]
    %v134 = vld [vmem:[#allocation5 + $0x34] sm:$0xf]
    %v135 = vld [vmem:[#allocation5 + $0x38] sm:$0xf]
    %v136 = vld [vmem:[#allocation5 + $0x3c] sm:$0xf]
    %v217 = vunpack.c.l.b16 %v41
    %v218 = vunpack.c.l.b16 %v42
    %v219 = vunpack.c.l.b16 %v43
    %v220 = vunpack.c.l.b16 %v44
    %v221 = vunpack.c.l.b16 %v45
    %v222 = vunpack.c.l.b16 %v46
    %v223 = vunpack.c.l.b16 %v47
    %v224 = vunpack.c.l.b16 %v48
    %v225 = vunpack.c.l.b16 %v49
    %v226 = vunpack.c.l.b16 %v50
    %v227 = vunpack.c.l.b16 %v51
    %v228 = vunpack.c.l.b16 %v52
    %v229 = vunpack.c.l.b16 %v53
    %v230 = vunpack.c.l.b16 %v54
    %v231 = vunpack.c.l.b16 %v55
    %v232 = vunpack.c.l.b16 %v56
    %v233 = vunpack.c.l.b16 %v57
    %v234 = vunpack.c.l.b16 %v58
    %v235 = vunpack.c.l.b16 %v59
    %v236 = vunpack.c.l.b16 %v60
    %v237 = vunpack.c.l.b16 %v61
    %v238 = vunpack.c.l.b16 %v62
    %v239 = vunpack.c.l.b16 %v63
    %v240 = vunpack.c.l.b16 %v64
    %v241 = vunpack.c.l.b16 %v65
    %v242 = vunpack.c.l.b16 %v66
    %v243 = vunpack.c.l.b16 %v67
    %v244 = vunpack.c.l.b16 %v68
    %v245 = vunpack.c.l.b16 %v69
    %v246 = vunpack.c.l.b16 %v70
    %v247 = vunpack.c.l.b16 %v71
    %v248 = vunpack.c.l.b16 %v72
    %v249 = vunpack.c.l.b16 %v73
    %v250 = vunpack.c.l.b16 %v74
    %v251 = vunpack.c.l.b16 %v75
    %v252 = vunpack.c.l.b16 %v76
    %v253 = vunpack.c.l.b16 %v77
    %v254 = vunpack.c.l.b16 %v78
    %v255 = vunpack.c.l.b16 %v79
    %v256 = vunpack.c.l.b16 %v80
    %v257 = vunpack.c.l.b16 %v81
    %v258 = vunpack.c.l.b16 %v82
    %v259 = vunpack.c.l.b16 %v83
    %v260 = vunpack.c.l.b16 %v84
    %v261 = vunpack.c.l.b16 %v85
    %v262 = vunpack.c.l.b16 %v86
    %v263 = vunpack.c.l.b16 %v87
    %v264 = vunpack.c.l.b16 %v88
    %v265 = vunpack.c.l.b16 %v89
    %v266 = vunpack.c.l.b16 %v90
    %v267 = vunpack.c.l.b16 %v91
    %v268 = vunpack.c.l.b16 %v92
    %v269 = vunpack.c.l.b16 %v93
    %v270 = vunpack.c.l.b16 %v94
    %v271 = vunpack.c.l.b16 %v95
    %v272 = vunpack.c.l.b16 %v96
    %v273 = vunpack.c.l.b16 %v97
    %v274 = vunpack.c.l.b16 %v98
    %v275 = vunpack.c.l.b16 %v99
    %v276 = vunpack.c.l.b16 %v100
    %v277 = vunpack.c.l.b16 %v101
    %v278 = vunpack.c.l.b16 %v102
    %v279 = vunpack.c.l.b16 %v103
    %v280 = vunpack.c.l.b16 %v104
    %v281 = vunpack.c.l.b16 %v105
    %v282 = vunpack.c.l.b16 %v106
    %v283 = vunpack.c.l.b16 %v107
    %v284 = vunpack.c.l.b16 %v108
    %v285 = vunpack.c.l.b16 %v109
    %v286 = vunpack.c.l.b16 %v110
    %v287 = vunpack.c.l.b16 %v111
    %v288 = vunpack.c.l.b16 %v112
    %v289 = vunpack.c.l.b16 %v113
    %v290 = vunpack.c.l.b16 %v114
    %v291 = vunpack.c.l.b16 %v115
    %v292 = vunpack.c.l.b16 %v116
    %v293 = vunpack.c.l.b16 %v117
    %v294 = vunpack.c.l.b16 %v118
    %v295 = vunpack.c.l.b16 %v119
    %v296 = vunpack.c.l.b16 %v120
    %v297 = vpack.c.b16 %v218, %v217
    %v298 = vpack.c.b16 %v220, %v219
    %v299 = vpack.c.b16 %v222, %v221
    %v300 = vpack.c.b16 %v224, %v223
    %v301 = vpack.c.b16 %v226, %v225
    %v302 = vpack.c.b16 %v228, %v227
    %v303 = vpack.c.b16 %v230, %v229
    %v304 = vpack.c.b16 %v232, %v231
    %v305 = vpack.c.b16 %v234, %v233
    %v306 = vpack.c.b16 %v236, %v235
    %v307 = vpack.c.b16 %v238, %v237
    %v308 = vpack.c.b16 %v240, %v239
    %v309 = vpack.c.b16 %v242, %v241
    %v310 = vpack.c.b16 %v244, %v243
    %v311 = vpack.c.b16 %v246, %v245
    %v312 = vpack.c.b16 %v248, %v247
    %v313 = vpack.c.b16 %v250, %v249
    %v314 = vpack.c.b16 %v252, %v251
    %v315 = vpack.c.b16 %v254, %v253
    %v316 = vpack.c.b16 %v256, %v255
    %v317 = vpack.c.b16 %v258, %v257
    %v318 = vpack.c.b16 %v260, %v259
    %v319 = vpack.c.b16 %v262, %v261
    %v320 = vpack.c.b16 %v264, %v263
    %v321 = vpack.c.b16 %v266, %v265
    %v322 = vpack.c.b16 %v268, %v267
    %v323 = vpack.c.b16 %v270, %v269
    %v324 = vpack.c.b16 %v272, %v271
    %v325 = vpack.c.b16 %v274, %v273
    %v326 = vpack.c.b16 %v276, %v275
    %v327 = vpack.c.b16 %v278, %v277
    %v328 = vpack.c.b16 %v280, %v279
    %v329 = vpack.c.b16 %v282, %v281
    %v330 = vpack.c.b16 %v284, %v283
    %v331 = vpack.c.b16 %v286, %v285
    %v332 = vpack.c.b16 %v288, %v287
    %v333 = vpack.c.b16 %v290, %v289
    %v334 = vpack.c.b16 %v292, %v291
    %v335 = vpack.c.b16 %v294, %v293
    %v336 = vpack.c.b16 %v296, %v295
    %v393 = vunpack.c.l.b16 %v121
    %v394 = vunpack.c.l.b16 %v122
    %v395 = vunpack.c.l.b16 %v123
    %v396 = vunpack.c.l.b16 %v124
    %v397 = vunpack.c.l.b16 %v125
    %v398 = vunpack.c.l.b16 %v126
    %v399 = vunpack.c.l.b16 %v127
    %v400 = vunpack.c.l.b16 %v128
    %v401 = vunpack.c.l.b16 %v129
    %v402 = vunpack.c.l.b16 %v130
    %v403 = vunpack.c.l.b16 %v131
    %v404 = vunpack.c.l.b16 %v132
    %v405 = vunpack.c.l.b16 %v133
    %v406 = vunpack.c.l.b16 %v134
    %v407 = vunpack.c.l.b16 %v135
    %v408 = vunpack.c.l.b16 %v136
    %v409 = vpack.c.b16 %v394, %v393
    %v410 = vpack.c.b16 %v396, %v395
    %v411 = vpack.c.b16 %v398, %v397
    %v412 = vpack.c.b16 %v400, %v399
    %v413 = vpack.c.b16 %v402, %v401
    %v414 = vpack.c.b16 %v404, %v403
    %v415 = vpack.c.b16 %v406, %v405
    %v416 = vpack.c.b16 %v408, %v407
    %425 = vmatprep.subr.bf16.mxu0 0
    %426 = vmatpush1.bf16.msra.mxu0 %v416
    %427 = vmatprep.subr.bf16.mxu0 0
    %428 = vmatpush1.bf16.msra.mxu0 %v415
    %429 = vmatprep.subr.bf16.mxu0 0
    %430 = vmatpush1.bf16.msra.mxu0 %v414
    %431 = vmatprep.subr.bf16.mxu0 0
    %432 = vmatpush1.bf16.msra.mxu0 %v413
    %433 = vmatprep.subr.bf16.mxu0 0
    %434 = vmatpush1.bf16.msra.mxu0 %v412
    %435 = vmatprep.subr.bf16.mxu0 0
    %436 = vmatpush1.bf16.msra.mxu0 %v411
    %437 = vmatprep.subr.bf16.mxu0 0
    %438 = vmatpush1.bf16.msra.mxu0 %v410
    %439 = vmatprep.subr.bf16.mxu0 0
    %440 = vmatpush1.bf16.msra.mxu0 %v409
    %441 = vmatprep.subr.bf16.mxu0 0
    %442 = vmatpush2.bf16.msra.mxu0 0
    %443 = vmatprep.subr.bf16.mxu0 0
    %444 = vmatpush2.bf16.msra.mxu0 0
    %445 = vmatprep.subr.bf16.mxu0 0
    %446 = vmatpush2.bf16.msra.mxu0 0
    %447 = vmatprep.subr.bf16.mxu0 0
    %448 = vmatpush2.bf16.msra.mxu0 0
    %449 = vmatprep.subr.bf16.mxu0 0
    %450 = vmatpush2.bf16.msra.mxu0 0
    %451 = vmatprep.subr.bf16.mxu0 0
    %452 = vmatpush2.bf16.msra.mxu0 0
    %453 = vmatprep.subr.bf16.mxu0 0
    %454 = vmatpush2.bf16.msra.mxu0 0
    %455 = vmatprep.subr.bf16.mxu0 0
    %456 = vmatpush2.bf16.msra.mxu0 0
    %457 = vmatprep.mubr.bf16.mxu0 0
    %458 = vmatmul.mubr.bf16.gmra.mxu0 %v297
    %v459 = vpop.f32.mrf.mxu0
    %v460 = vadd.f32 0.0, %v459
    %v461 = vpop.f32.mrf.mxu0
    %v462 = vpop.f32.mrf.mxu0
    %v463 = vadd.f32 0.0, %v462
    %v464 = vpop.f32.mrf.mxu0
    %465 = vmatprep.mubr.bf16.mxu0 0
    %466 = vmatmul.mubr.bf16.gmra.mxu0 %v298
    %v467 = vpop.f32.mrf.mxu0
    %v468 = vadd.f32 0.0, %v467
    %v469 = vpop.f32.mrf.mxu0
    %v470 = vpop.f32.mrf.mxu0
    %v471 = vadd.f32 0.0, %v470
    %v472 = vpop.f32.mrf.mxu0
    %473 = vmatprep.mubr.bf16.mxu0 0
    %474 = vmatmul.mubr.bf16.gmra.mxu0 %v299
    %v475 = vpop.f32.mrf.mxu0
    %v476 = vadd.f32 0.0, %v475
    %v477 = vpop.f32.mrf.mxu0
    %v478 = vpop.f32.mrf.mxu0
    %v479 = vadd.f32 0.0, %v478
    %v480 = vpop.f32.mrf.mxu0
    %481 = vmatprep.mubr.bf16.mxu0 0
    %482 = vmatmul.mubr.bf16.gmra.mxu0 %v300
    %v483 = vpop.f32.mrf.mxu0
    %v484 = vadd.f32 0.0, %v483
    %v485 = vpop.f32.mrf.mxu0
    %v486 = vpop.f32.mrf.mxu0
    %v487 = vadd.f32 0.0, %v486
    %v488 = vpop.f32.mrf.mxu0
    %489 = vmatprep.mubr.bf16.mxu0 0
    %490 = vmatmul.mubr.bf16.gmra.mxu0 %v301
    %v491 = vpop.f32.mrf.mxu0
    %v492 = vadd.f32 0.0, %v491
    %v493 = vpop.f32.mrf.mxu0
    %v494 = vpop.f32.mrf.mxu0
    %v495 = vadd.f32 0.0, %v494
    %v496 = vpop.f32.mrf.mxu0
    %497 = vmatprep.mubr.bf16.mxu0 0
    %498 = vmatmul.mubr.bf16.gmra.mxu0 %v302
    %v499 = vpop.f32.mrf.mxu0
    %v500 = vadd.f32 0.0, %v499
    %v501 = vpop.f32.mrf.mxu0
    %v502 = vpop.f32.mrf.mxu0
    %v503 = vadd.f32 0.0, %v502
    %v504 = vpop.f32.mrf.mxu0
    %505 = vmatprep.mubr.bf16.mxu0 0
    %506 = vmatmul.mubr.bf16.gmra.mxu0 %v303
    %v507 = vpop.f32.mrf.mxu0
    %v508 = vadd.f32 0.0, %v507
    %v509 = vpop.f32.mrf.mxu0
    %v510 = vpop.f32.mrf.mxu0
    %v511 = vadd.f32 0.0, %v510
    %v512 = vpop.f32.mrf.mxu0
    %513 = vmatprep.mubr.bf16.mxu0 0
    %514 = vmatmul.mubr.bf16.gmra.mxu0 %v304
    %v515 = vpop.f32.mrf.mxu0
    %v516 = vadd.f32 0.0, %v515
    %v517 = vpop.f32.mrf.mxu0
    %v518 = vpop.f32.mrf.mxu0
    %v519 = vadd.f32 0.0, %v518
    %v520 = vpop.f32.mrf.mxu0
    %521 = vmatprep.mubr.bf16.mxu0 0
    %522 = vmatmul.mubr.bf16.gmra.mxu0 %v305
    %v523 = vpop.f32.mrf.mxu0
    %v524 = vadd.f32 0.0, %v523
    %v525 = vpop.f32.mrf.mxu0
    %v526 = vpop.f32.mrf.mxu0
    %v527 = vadd.f32 0.0, %v526
    %v528 = vpop.f32.mrf.mxu0
    %529 = vmatprep.mubr.bf16.mxu0 0
    %530 = vmatmul.mubr.bf16.gmra.mxu0 %v306
    %v531 = vpop.f32.mrf.mxu0
    %v532 = vadd.f32 0.0, %v531
    %v533 = vpop.f32.mrf.mxu0
    %v534 = vpop.f32.mrf.mxu0
    %v535 = vadd.f32 0.0, %v534
    %v536 = vpop.f32.mrf.mxu0
    %537 = vmatprep.mubr.bf16.mxu0 0
    %538 = vmatmul.mubr.bf16.gmra.mxu0 %v307
    %v539 = vpop.f32.mrf.mxu0
    %v540 = vadd.f32 0.0, %v539
    %v541 = vpop.f32.mrf.mxu0
    %v542 = vpop.f32.mrf.mxu0
    %v543 = vadd.f32 0.0, %v542
    %v544 = vpop.f32.mrf.mxu0
    %545 = vmatprep.mubr.bf16.mxu0 0
    %546 = vmatmul.mubr.bf16.gmra.mxu0 %v308
    %v547 = vpop.f32.mrf.mxu0
    %v548 = vadd.f32 0.0, %v547
    %v549 = vpop.f32.mrf.mxu0
    %v550 = vpop.f32.mrf.mxu0
    %v551 = vadd.f32 0.0, %v550
    %v552 = vpop.f32.mrf.mxu0
    %553 = vmatprep.mubr.bf16.mxu0 0
    %554 = vmatmul.mubr.bf16.gmra.mxu0 %v309
    %v555 = vpop.f32.mrf.mxu0
    %v556 = vadd.f32 0.0, %v555
    %v557 = vpop.f32.mrf.mxu0
    %v558 = vpop.f32.mrf.mxu0
    %v559 = vadd.f32 0.0, %v558
    %v560 = vpop.f32.mrf.mxu0
    %561 = vmatprep.mubr.bf16.mxu0 0
    %562 = vmatmul.mubr.bf16.gmra.mxu0 %v310
    %v563 = vpop.f32.mrf.mxu0
    %v564 = vadd.f32 0.0, %v563
    %v565 = vpop.f32.mrf.mxu0
    %v566 = vpop.f32.mrf.mxu0
    %v567 = vadd.f32 0.0, %v566
    %v568 = vpop.f32.mrf.mxu0
    %569 = vmatprep.mubr.bf16.mxu0 0
    %570 = vmatmul.mubr.bf16.gmra.mxu0 %v311
    %v571 = vpop.f32.mrf.mxu0
    %v572 = vadd.f32 0.0, %v571
    %v573 = vpop.f32.mrf.mxu0
    %v574 = vpop.f32.mrf.mxu0
    %v575 = vadd.f32 0.0, %v574
    %v576 = vpop.f32.mrf.mxu0
    %577 = vmatprep.mubr.bf16.mxu0 0
    %578 = vmatmul.mubr.bf16.gmra.mxu0 %v312
    %v579 = vpop.f32.mrf.mxu0
    %v580 = vadd.f32 0.0, %v579
    %v581 = vpop.f32.mrf.mxu0
    %v582 = vpop.f32.mrf.mxu0
    %v583 = vadd.f32 0.0, %v582
    %v584 = vpop.f32.mrf.mxu0
    %585 = vmatprep.mubr.bf16.mxu0 0
    %586 = vmatmul.mubr.bf16.gmra.mxu0 %v313
    %v587 = vpop.f32.mrf.mxu0
    %v588 = vadd.f32 0.0, %v587
    %v589 = vpop.f32.mrf.mxu0
    %v590 = vpop.f32.mrf.mxu0
    %v591 = vadd.f32 0.0, %v590
    %v592 = vpop.f32.mrf.mxu0
    %593 = vmatprep.mubr.bf16.mxu0 0
    %594 = vmatmul.mubr.bf16.gmra.mxu0 %v314
    %v595 = vpop.f32.mrf.mxu0
    %v596 = vadd.f32 0.0, %v595
    %v597 = vpop.f32.mrf.mxu0
    %v598 = vpop.f32.mrf.mxu0
    %v599 = vadd.f32 0.0, %v598
    %v600 = vpop.f32.mrf.mxu0
    %601 = vmatprep.mubr.bf16.mxu0 0
    %602 = vmatmul.mubr.bf16.gmra.mxu0 %v315
    %v603 = vpop.f32.mrf.mxu0
    %v604 = vadd.f32 0.0, %v603
    %v605 = vpop.f32.mrf.mxu0
    %v606 = vpop.f32.mrf.mxu0
    %v607 = vadd.f32 0.0, %v606
    %v608 = vpop.f32.mrf.mxu0
    %609 = vmatprep.mubr.bf16.mxu0 0
    %610 = vmatmul.mubr.bf16.gmra.mxu0 %v316
    %v611 = vpop.f32.mrf.mxu0
    %v612 = vadd.f32 0.0, %v611
    %v613 = vpop.f32.mrf.mxu0
    %v614 = vpop.f32.mrf.mxu0
    %v615 = vadd.f32 0.0, %v614
    %v616 = vpop.f32.mrf.mxu0
    %617 = vmatprep.mubr.bf16.mxu0 0
    %618 = vmatmul.mubr.bf16.gmra.mxu0 %v317
    %v619 = vpop.f32.mrf.mxu0
    %v620 = vadd.f32 0.0, %v619
    %v621 = vpop.f32.mrf.mxu0
    %v622 = vpop.f32.mrf.mxu0
    %v623 = vadd.f32 0.0, %v622
    %v624 = vpop.f32.mrf.mxu0
    %625 = vmatprep.mubr.bf16.mxu0 0
    %626 = vmatmul.mubr.bf16.gmra.mxu0 %v318
    %v627 = vpop.f32.mrf.mxu0
    %v628 = vadd.f32 0.0, %v627
    %v629 = vpop.f32.mrf.mxu0
    %v630 = vpop.f32.mrf.mxu0
    %v631 = vadd.f32 0.0, %v630
    %v632 = vpop.f32.mrf.mxu0
    %633 = vmatprep.mubr.bf16.mxu0 0
    %634 = vmatmul.mubr.bf16.gmra.mxu0 %v319
    %v635 = vpop.f32.mrf.mxu0
    %v636 = vadd.f32 0.0, %v635
    %v637 = vpop.f32.mrf.mxu0
    %v638 = vpop.f32.mrf.mxu0
    %v639 = vadd.f32 0.0, %v638
    %v640 = vpop.f32.mrf.mxu0
    %641 = vmatprep.mubr.bf16.mxu0 0
    %642 = vmatmul.mubr.bf16.gmra.mxu0 %v320
    %v643 = vpop.f32.mrf.mxu0
    %v644 = vadd.f32 0.0, %v643
    %v645 = vpop.f32.mrf.mxu0
    %v646 = vpop.f32.mrf.mxu0
    %v647 = vadd.f32 0.0, %v646
    %v648 = vpop.f32.mrf.mxu0
    %649 = vmatprep.mubr.bf16.mxu0 0
    %650 = vmatmul.mubr.bf16.gmra.mxu0 %v321
    %v651 = vpop.f32.mrf.mxu0
    %v652 = vadd.f32 0.0, %v651
    %v653 = vpop.f32.mrf.mxu0
    %v654 = vpop.f32.mrf.mxu0
    %v655 = vadd.f32 0.0, %v654
    %v656 = vpop.f32.mrf.mxu0
    %657 = vmatprep.mubr.bf16.mxu0 0
    %658 = vmatmul.mubr.bf16.gmra.mxu0 %v322
    %v659 = vpop.f32.mrf.mxu0
    %v660 = vadd.f32 0.0, %v659
    %v661 = vpop.f32.mrf.mxu0
    %v662 = vpop.f32.mrf.mxu0
    %v663 = vadd.f32 0.0, %v662
    %v664 = vpop.f32.mrf.mxu0
    %665 = vmatprep.mubr.bf16.mxu0 0
    %666 = vmatmul.mubr.bf16.gmra.mxu0 %v323
    %v667 = vpop.f32.mrf.mxu0
    %v668 = vadd.f32 0.0, %v667
    %v669 = vpop.f32.mrf.mxu0
    %v670 = vpop.f32.mrf.mxu0
    %v671 = vadd.f32 0.0, %v670
    %v672 = vpop.f32.mrf.mxu0
    %673 = vmatprep.mubr.bf16.mxu0 0
    %674 = vmatmul.mubr.bf16.gmra.mxu0 %v324
    %v675 = vpop.f32.mrf.mxu0
    %v676 = vadd.f32 0.0, %v675
    %v677 = vpop.f32.mrf.mxu0
    %v678 = vpop.f32.mrf.mxu0
    %v679 = vadd.f32 0.0, %v678
    %v680 = vpop.f32.mrf.mxu0
    %681 = vmatprep.mubr.bf16.mxu0 0
    %682 = vmatmul.mubr.bf16.gmra.mxu0 %v325
    %v683 = vpop.f32.mrf.mxu0
    %v684 = vadd.f32 0.0, %v683
    %v685 = vpop.f32.mrf.mxu0
    %v686 = vpop.f32.mrf.mxu0
    %v687 = vadd.f32 0.0, %v686
    %v688 = vpop.f32.mrf.mxu0
    %689 = vmatprep.mubr.bf16.mxu0 0
    %690 = vmatmul.mubr.bf16.gmra.mxu0 %v326
    %v691 = vpop.f32.mrf.mxu0
    %v692 = vadd.f32 0.0, %v691
    %v693 = vpop.f32.mrf.mxu0
    %v694 = vpop.f32.mrf.mxu0
    %v695 = vadd.f32 0.0, %v694
    %v696 = vpop.f32.mrf.mxu0
    %697 = vmatprep.mubr.bf16.mxu0 0
    %698 = vmatmul.mubr.bf16.gmra.mxu0 %v327
    %v699 = vpop.f32.mrf.mxu0
    %v700 = vadd.f32 0.0, %v699
    %v701 = vpop.f32.mrf.mxu0
    %v702 = vpop.f32.mrf.mxu0
    %v703 = vadd.f32 0.0, %v702
    %v704 = vpop.f32.mrf.mxu0
    %705 = vmatprep.mubr.bf16.mxu0 0
    %706 = vmatmul.mubr.bf16.gmra.mxu0 %v328
    %v707 = vpop.f32.mrf.mxu0
    %v708 = vadd.f32 0.0, %v707
    %v709 = vpop.f32.mrf.mxu0
    %v710 = vpop.f32.mrf.mxu0
    %v711 = vadd.f32 0.0, %v710
    %v712 = vpop.f32.mrf.mxu0
    %713 = vmatprep.mubr.bf16.mxu0 0
    %714 = vmatmul.mubr.bf16.gmra.mxu0 %v329
    %v715 = vpop.f32.mrf.mxu0
    %v716 = vadd.f32 0.0, %v715
    %v717 = vpop.f32.mrf.mxu0
    %v718 = vpop.f32.mrf.mxu0
    %v719 = vadd.f32 0.0, %v718
    %v720 = vpop.f32.mrf.mxu0
    %721 = vmatprep.mubr.bf16.mxu0 0
    %722 = vmatmul.mubr.bf16.gmra.mxu0 %v330
    %v723 = vpop.f32.mrf.mxu0
    %v724 = vadd.f32 0.0, %v723
    %v725 = vpop.f32.mrf.mxu0
    %v726 = vpop.f32.mrf.mxu0
    %v727 = vadd.f32 0.0, %v726
    %v728 = vpop.f32.mrf.mxu0
    %729 = vmatprep.mubr.bf16.mxu0 0
    %730 = vmatmul.mubr.bf16.gmra.mxu0 %v331
    %v731 = vpop.f32.mrf.mxu0
    %v732 = vadd.f32 0.0, %v731
    %v733 = vpop.f32.mrf.mxu0
    %v734 = vpop.f32.mrf.mxu0
    %v735 = vadd.f32 0.0, %v734
    %v736 = vpop.f32.mrf.mxu0
    %737 = vmatprep.mubr.bf16.mxu0 0
    %738 = vmatmul.mubr.bf16.gmra.mxu0 %v332
    %v739 = vpop.f32.mrf.mxu0
    %v740 = vadd.f32 0.0, %v739
    %v741 = vpop.f32.mrf.mxu0
    %v742 = vpop.f32.mrf.mxu0
    %v743 = vadd.f32 0.0, %v742
    %v744 = vpop.f32.mrf.mxu0
    %745 = vmatprep.mubr.bf16.mxu0 0
    %746 = vmatmul.mubr.bf16.gmra.mxu0 %v333
    %v747 = vpop.f32.mrf.mxu0
    %v748 = vadd.f32 0.0, %v747
    %v749 = vpop.f32.mrf.mxu0
    %v750 = vpop.f32.mrf.mxu0
    %v751 = vadd.f32 0.0, %v750
    %v752 = vpop.f32.mrf.mxu0
    %753 = vmatprep.mubr.bf16.mxu0 0
    %754 = vmatmul.mubr.bf16.gmra.mxu0 %v334
    %v755 = vpop.f32.mrf.mxu0
    %v756 = vadd.f32 0.0, %v755
    %v757 = vpop.f32.mrf.mxu0
    %v758 = vpop.f32.mrf.mxu0
    %v759 = vadd.f32 0.0, %v758
    %v760 = vpop.f32.mrf.mxu0
    %761 = vmatprep.mubr.bf16.mxu0 0
    %762 = vmatmul.mubr.bf16.gmra.mxu0 %v335
    %v763 = vpop.f32.mrf.mxu0
    %v764 = vadd.f32 0.0, %v763
    %v765 = vpop.f32.mrf.mxu0
    %v766 = vpop.f32.mrf.mxu0
    %v767 = vadd.f32 0.0, %v766
    %v768 = vpop.f32.mrf.mxu0
    %769 = vmatprep.mubr.bf16.mxu0 0
    %770 = vmatmul.mubr.bf16.gmra.mxu0 %v336
    %v771 = vpop.f32.mrf.mxu0
    %v772 = vadd.f32 0.0, %v771
    %v773 = vpop.f32.mrf.mxu0
    %v774 = vpop.f32.mrf.mxu0
    %v775 = vadd.f32 0.0, %v774
    %v776 = vpop.f32.mrf.mxu0
    %777 = vdwg.mxu0
    %v778 = vpack.c.bf16 %v463, %v460
    %v779 = vpack.c.bf16 %v471, %v468
    %v780 = vpack.c.bf16 %v479, %v476
    %v781 = vpack.c.bf16 %v487, %v484
    %v782 = vpack.c.bf16 %v495, %v492
    %v783 = vpack.c.bf16 %v503, %v500
    %v784 = vpack.c.bf16 %v511, %v508
    %v785 = vpack.c.bf16 %v519, %v516
    %v786 = vpack.c.bf16 %v527, %v524
    %v787 = vpack.c.bf16 %v535, %v532
    %v788 = vpack.c.bf16 %v543, %v540
    %v789 = vpack.c.bf16 %v551, %v548
    %v790 = vpack.c.bf16 %v559, %v556
    %v791 = vpack.c.bf16 %v567, %v564
    %v792 = vpack.c.bf16 %v575, %v572
    %v793 = vpack.c.bf16 %v583, %v580
    %v794 = vpack.c.bf16 %v591, %v588
    %v795 = vpack.c.bf16 %v599, %v596
    %v796 = vpack.c.bf16 %v607, %v604
    %v797 = vpack.c.bf16 %v615, %v612
    %v798 = vpack.c.bf16 %v623, %v620
    %v799 = vpack.c.bf16 %v631, %v628
    %v800 = vpack.c.bf16 %v639, %v636
    %v801 = vpack.c.bf16 %v647, %v644
    %v802 = vpack.c.bf16 %v655, %v652
    %v803 = vpack.c.bf16 %v663, %v660
    %v804 = vpack.c.bf16 %v671, %v668
    %v805 = vpack.c.bf16 %v679, %v676
    %v806 = vpack.c.bf16 %v687, %v684
    %v807 = vpack.c.bf16 %v695, %v692
    %v808 = vpack.c.bf16 %v703, %v700
    %v809 = vpack.c.bf16 %v711, %v708
    %v810 = vpack.c.bf16 %v719, %v716
    %v811 = vpack.c.bf16 %v727, %v724
    %v812 = vpack.c.bf16 %v735, %v732
    %v813 = vpack.c.bf16 %v743, %v740
    %v814 = vpack.c.bf16 %v751, %v748
    %v815 = vpack.c.bf16 %v759, %v756
    %v816 = vpack.c.bf16 %v767, %v764
    %v817 = vpack.c.bf16 %v775, %v772
    %v858 = vunpack.c.l.b16 %v778
    %v859 = vunpack.c.h.b16 %v778
    %v860 = vunpack.c.l.b16 %v779
    %v861 = vunpack.c.h.b16 %v779
    %v862 = vunpack.c.l.b16 %v780
    %v863 = vunpack.c.h.b16 %v780
    %v864 = vunpack.c.l.b16 %v781
    %v865 = vunpack.c.h.b16 %v781
    %v866 = vunpack.c.l.b16 %v782
    %v867 = vunpack.c.h.b16 %v782
    %v868 = vunpack.c.l.b16 %v783
    %v869 = vunpack.c.h.b16 %v783
    %v870 = vunpack.c.l.b16 %v784
    %v871 = vunpack.c.h.b16 %v784
    %v872 = vunpack.c.l.b16 %v785
    %v873 = vunpack.c.h.b16 %v785
    %v874 = vunpack.c.l.b16 %v786
    %v875 = vunpack.c.h.b16 %v786
    %v876 = vunpack.c.l.b16 %v787
    %v877 = vunpack.c.h.b16 %v787
    %v878 = vunpack.c.l.b16 %v788
    %v879 = vunpack.c.h.b16 %v788
    %v880 = vunpack.c.l.b16 %v789
    %v881 = vunpack.c.h.b16 %v789
    %v882 = vunpack.c.l.b16 %v790
    %v883 = vunpack.c.h.b16 %v790
    %v884 = vunpack.c.l.b16 %v791
    %v885 = vunpack.c.h.b16 %v791
    %v886 = vunpack.c.l.b16 %v792
    %v887 = vunpack.c.h.b16 %v792
    %v888 = vunpack.c.l.b16 %v793
    %v889 = vunpack.c.h.b16 %v793
    %v890 = vunpack.c.l.b16 %v794
    %v891 = vunpack.c.h.b16 %v794
    %v892 = vunpack.c.l.b16 %v795
    %v893 = vunpack.c.h.b16 %v795
    %v894 = vunpack.c.l.b16 %v796
    %v895 = vunpack.c.h.b16 %v796
    %v896 = vunpack.c.l.b16 %v797
    %v897 = vunpack.c.h.b16 %v797
    %v898 = vunpack.c.l.b16 %v798
    %v899 = vunpack.c.h.b16 %v798
    %v900 = vunpack.c.l.b16 %v799
    %v901 = vunpack.c.h.b16 %v799
    %v902 = vunpack.c.l.b16 %v800
    %v903 = vunpack.c.h.b16 %v800
    %v904 = vunpack.c.l.b16 %v801
    %v905 = vunpack.c.h.b16 %v801
    %v906 = vunpack.c.l.b16 %v802
    %v907 = vunpack.c.h.b16 %v802
    %v908 = vunpack.c.l.b16 %v803
    %v909 = vunpack.c.h.b16 %v803
    %v910 = vunpack.c.l.b16 %v804
    %v911 = vunpack.c.h.b16 %v804
    %v912 = vunpack.c.l.b16 %v805
    %v913 = vunpack.c.h.b16 %v805
    %v914 = vunpack.c.l.b16 %v806
    %v915 = vunpack.c.h.b16 %v806
    %v916 = vunpack.c.l.b16 %v807
    %v917 = vunpack.c.h.b16 %v807
    %v918 = vunpack.c.l.b16 %v808
    %v919 = vunpack.c.h.b16 %v808
    %v920 = vunpack.c.l.b16 %v809
    %v921 = vunpack.c.h.b16 %v809
    %v922 = vunpack.c.l.b16 %v810
    %v923 = vunpack.c.h.b16 %v810
    %v924 = vunpack.c.l.b16 %v811
    %v925 = vunpack.c.h.b16 %v811
    %v926 = vunpack.c.l.b16 %v812
    %v927 = vunpack.c.h.b16 %v812
    %v928 = vunpack.c.l.b16 %v813
    %v929 = vunpack.c.h.b16 %v813
    %v930 = vunpack.c.l.b16 %v814
    %v931 = vunpack.c.h.b16 %v814
    %v932 = vunpack.c.l.b16 %v815
    %v933 = vunpack.c.h.b16 %v815
    %v934 = vunpack.c.l.b16 %v816
    %v935 = vunpack.c.h.b16 %v816
    %v936 = vunpack.c.l.b16 %v817
    %v937 = vunpack.c.h.b16 %v817
    %v938 = vpack.c.b16 %v858, %v858
    %v939 = vpack.c.b16 %v859, %v859
    %v940 = vpack.c.b16 %v860, %v860
    %v941 = vpack.c.b16 %v861, %v861
    %v942 = vpack.c.b16 %v862, %v862
    %v943 = vpack.c.b16 %v863, %v863
    %v944 = vpack.c.b16 %v864, %v864
    %v945 = vpack.c.b16 %v865, %v865
    %v946 = vpack.c.b16 %v866, %v866
    %v947 = vpack.c.b16 %v867, %v867
    %v948 = vpack.c.b16 %v868, %v868
    %v949 = vpack.c.b16 %v869, %v869
    %v950 = vpack.c.b16 %v870, %v870
    %v951 = vpack.c.b16 %v871, %v871
    %v952 = vpack.c.b16 %v872, %v872
    %v953 = vpack.c.b16 %v873, %v873
    %v954 = vpack.c.b16 %v874, %v874
    %v955 = vpack.c.b16 %v875, %v875
    %v956 = vpack.c.b16 %v876, %v876
    %v957 = vpack.c.b16 %v877, %v877
    %v958 = vpack.c.b16 %v878, %v878
    %v959 = vpack.c.b16 %v879, %v879
    %v960 = vpack.c.b16 %v880, %v880
    %v961 = vpack.c.b16 %v881, %v881
    %v962 = vpack.c.b16 %v882, %v882
    %v963 = vpack.c.b16 %v883, %v883
    %v964 = vpack.c.b16 %v884, %v884
    %v965 = vpack.c.b16 %v885, %v885
    %v966 = vpack.c.b16 %v886, %v886
    %v967 = vpack.c.b16 %v887, %v887
    %v968 = vpack.c.b16 %v888, %v888
    %v969 = vpack.c.b16 %v889, %v889
    %v970 = vpack.c.b16 %v890, %v890
    %v971 = vpack.c.b16 %v891, %v891
    %v972 = vpack.c.b16 %v892, %v892
    %v973 = vpack.c.b16 %v893, %v893
    %v974 = vpack.c.b16 %v894, %v894
    %v975 = vpack.c.b16 %v895, %v895
    %v976 = vpack.c.b16 %v896, %v896
    %v977 = vpack.c.b16 %v897, %v897
    %v978 = vpack.c.b16 %v898, %v898
    %v979 = vpack.c.b16 %v899, %v899
    %v980 = vpack.c.b16 %v900, %v900
    %v981 = vpack.c.b16 %v901, %v901
    %v982 = vpack.c.b16 %v902, %v902
    %v983 = vpack.c.b16 %v903, %v903
    %v984 = vpack.c.b16 %v904, %v904
    %v985 = vpack.c.b16 %v905, %v905
    %v986 = vpack.c.b16 %v906, %v906
    %v987 = vpack.c.b16 %v907, %v907
    %v988 = vpack.c.b16 %v908, %v908
    %v989 = vpack.c.b16 %v909, %v909
    %v990 = vpack.c.b16 %v910, %v910
    %v991 = vpack.c.b16 %v911, %v911
    %v992 = vpack.c.b16 %v912, %v912
    %v993 = vpack.c.b16 %v913, %v913
    %v994 = vpack.c.b16 %v914, %v914
    %v995 = vpack.c.b16 %v915, %v915
    %v996 = vpack.c.b16 %v916, %v916
    %v997 = vpack.c.b16 %v917, %v917
    %v998 = vpack.c.b16 %v918, %v918
    %v999 = vpack.c.b16 %v919, %v919
    %v1000 = vpack.c.b16 %v920, %v920
    %v1001 = vpack.c.b16 %v921, %v921
    %v1002 = vpack.c.b16 %v922, %v922
    %v1003 = vpack.c.b16 %v923, %v923
    %v1004 = vpack.c.b16 %v924, %v924
    %v1005 = vpack.c.b16 %v925, %v925
    %v1006 = vpack.c.b16 %v926, %v926
    %v1007 = vpack.c.b16 %v927, %v927
    %v1008 = vpack.c.b16 %v928, %v928
    %v1009 = vpack.c.b16 %v929, %v929
    %v1010 = vpack.c.b16 %v930, %v930
    %v1011 = vpack.c.b16 %v931, %v931
    %v1012 = vpack.c.b16 %v932, %v932
    %v1013 = vpack.c.b16 %v933, %v933
    %v1014 = vpack.c.b16 %v934, %v934
    %v1015 = vpack.c.b16 %v935, %v935
    %v1016 = vpack.c.b16 %v936, %v936
    %v1017 = vpack.c.b16 %v937, %v937
    %1098 = vst [vmem:[#allocation7] sm:$0xf] %v938
    %1099 = vst [vmem:[#allocation7 + $0x4] sm:$0xf] %v939
    %1100 = vst [vmem:[#allocation7 + $0x8] sm:$0xf] %v940
    %1101 = vst [vmem:[#allocation7 + $0xc] sm:$0xf] %v941
    %1102 = vst [vmem:[#allocation7 + $0x10] sm:$0xf] %v942
    %1103 = vst [vmem:[#allocation7 + $0x14] sm:$0xf] %v943
    %1104 = vst [vmem:[#allocation7 + $0x18] sm:$0xf] %v944
    %1105 = vst [vmem:[#allocation7 + $0x1c] sm:$0xf] %v945
    %1106 = vst [vmem:[#allocation7 + $0x20] sm:$0xf] %v946
    %1107 = vst [vmem:[#allocation7 + $0x24] sm:$0xf] %v947
    %1108 = vst [vmem:[#allocation7 + $0x28] sm:$0xf] %v948
    %1109 = vst [vmem:[#allocation7 + $0x2c] sm:$0xf] %v949
    %1110 = vst [vmem:[#allocation7 + $0x30] sm:$0xf] %v950
    %1111 = vst [vmem:[#allocation7 + $0x34] sm:$0xf] %v951
    %1112 = vst [vmem:[#allocation7 + $0x38] sm:$0xf] %v952
    %1113 = vst [vmem:[#allocation7 + $0x3c] sm:$0xf] %v953
    %1114 = vst [vmem:[#allocation7 + $0x40] sm:$0xf] %v954
    %1115 = vst [vmem:[#allocation7 + $0x44] sm:$0xf] %v955
    %1116 = vst [vmem:[#allocation7 + $0x48] sm:$0xf] %v956
    %1117 = vst [vmem:[#allocation7 + $0x4c] sm:$0xf] %v957
    %1118 = vst [vmem:[#allocation7 + $0x50] sm:$0xf] %v958
    %1119 = vst [vmem:[#allocation7 + $0x54] sm:$0xf] %v959
    %1120 = vst [vmem:[#allocation7 + $0x58] sm:$0xf] %v960
    %1121 = vst [vmem:[#allocation7 + $0x5c] sm:$0xf] %v961
    %1122 = vst [vmem:[#allocation7 + $0x60] sm:$0xf] %v962
    %1123 = vst [vmem:[#allocation7 + $0x64] sm:$0xf] %v963
    %1124 = vst [vmem:[#allocation7 + $0x68] sm:$0xf] %v964
    %1125 = vst [vmem:[#allocation7 + $0x6c] sm:$0xf] %v965
    %1126 = vst [vmem:[#allocation7 + $0x70] sm:$0xf] %v966
    %1127 = vst [vmem:[#allocation7 + $0x74] sm:$0xf] %v967
    %1128 = vst [vmem:[#allocation7 + $0x78] sm:$0xf] %v968
    %1129 = vst [vmem:[#allocation7 + $0x7c] sm:$0xf] %v969
    %1130 = vst [vmem:[#allocation7 + $0x80] sm:$0xf] %v970
    %1131 = vst [vmem:[#allocation7 + $0x84] sm:$0xf] %v971
    %1132 = vst [vmem:[#allocation7 + $0x88] sm:$0xf] %v972
    %1133 = vst [vmem:[#allocation7 + $0x8c] sm:$0xf] %v973
    %1134 = vst [vmem:[#allocation7 + $0x90] sm:$0xf] %v974
    %1135 = vst [vmem:[#allocation7 + $0x94] sm:$0xf] %v975
    %1136 = vst [vmem:[#allocation7 + $0x98] sm:$0xf] %v976
    %1137 = vst [vmem:[#allocation7 + $0x9c] sm:$0xf] %v977
    %1138 = vst [vmem:[#allocation7 + $0xa0] sm:$0xf] %v978
    %1139 = vst [vmem:[#allocation7 + $0xa4] sm:$0xf] %v979
    %1140 = vst [vmem:[#allocation7 + $0xa8] sm:$0xf] %v980
    %1141 = vst [vmem:[#allocation7 + $0xac] sm:$0xf] %v981
    %1142 = vst [vmem:[#allocation7 + $0xb0] sm:$0xf] %v982
    %1143 = vst [vmem:[#allocation7 + $0xb4] sm:$0xf] %v983
    %1144 = vst [vmem:[#allocation7 + $0xb8] sm:$0xf] %v984
    %1145 = vst [vmem:[#allocation7 + $0xbc] sm:$0xf] %v985
    %1146 = vst [vmem:[#allocation7 + $0xc0] sm:$0xf] %v986
    %1147 = vst [vmem:[#allocation7 + $0xc4] sm:$0xf] %v987
    %1148 = vst [vmem:[#allocation7 + $0xc8] sm:$0xf] %v988
    %1149 = vst [vmem:[#allocation7 + $0xcc] sm:$0xf] %v989
    %1150 = vst [vmem:[#allocation7 + $0xd0] sm:$0xf] %v990
    %1151 = vst [vmem:[#allocation7 + $0xd4] sm:$0xf] %v991
    %1152 = vst [vmem:[#allocation7 + $0xd8] sm:$0xf] %v992
    %1153 = vst [vmem:[#allocation7 + $0xdc] sm:$0xf] %v993
    %1154 = vst [vmem:[#allocation7 + $0xe0] sm:$0xf] %v994
    %1155 = vst [vmem:[#allocation7 + $0xe4] sm:$0xf] %v995
    %1156 = vst [vmem:[#allocation7 + $0xe8] sm:$0xf] %v996
    %1157 = vst [vmem:[#allocation7 + $0xec] sm:$0xf] %v997
    %1158 = vst [vmem:[#allocation7 + $0xf0] sm:$0xf] %v998
    %1159 = vst [vmem:[#allocation7 + $0xf4] sm:$0xf] %v999
    %1160 = vst [vmem:[#allocation7 + $0xf8] sm:$0xf] %v1000
    %1161 = vst [vmem:[#allocation7 + $0xfc] sm:$0xf] %v1001
    %1162 = vst [vmem:[#allocation7 + $0x100] sm:$0xf] %v1002
    %1163 = vst [vmem:[#allocation7 + $0x104] sm:$0xf] %v1003
    %1164 = vst [vmem:[#allocation7 + $0x108] sm:$0xf] %v1004
    %1165 = vst [vmem:[#allocation7 + $0x10c] sm:$0xf] %v1005
    %1166 = vst [vmem:[#allocation7 + $0x110] sm:$0xf] %v1006
    %1167 = vst [vmem:[#allocation7 + $0x114] sm:$0xf] %v1007
    %1168 = vst [vmem:[#allocation7 + $0x118] sm:$0xf] %v1008
    %1169 = vst [vmem:[#allocation7 + $0x11c] sm:$0xf] %v1009
    %1170 = vst [vmem:[#allocation7 + $0x120] sm:$0xf] %v1010
    %1171 = vst [vmem:[#allocation7 + $0x124] sm:$0xf] %v1011
    %1172 = vst [vmem:[#allocation7 + $0x128] sm:$0xf] %v1012
    %1173 = vst [vmem:[#allocation7 + $0x12c] sm:$0xf] %v1013
    %1174 = vst [vmem:[#allocation7 + $0x130] sm:$0xf] %v1014
    %1175 = vst [vmem:[#allocation7 + $0x134] sm:$0xf] %v1015
    %1176 = vst [vmem:[#allocation7 + $0x138] sm:$0xf] %v1016
    %1177 = vst [vmem:[#allocation7 + $0x13c] sm:$0xf] %v1017
    // Predicated region
    $region18: #{tpu_custom_call.1} parent=1 // pred_check
      _
    $region19: #{tpu_custom_call.1} parent=1 // pred_check_branch
      %1179 = sbr.rel (0) target = $region21
    $region20: #{tpu_custom_call.1} parent=1 // pred_region
      %s1181 = ssub.s32 5120, 5120
      %1182 = vsyncadd [#allocation4], %s1181
      %s1183 = sshll.u32 [#allocation7], 4
      %s1184 = int_to_ptr.vmem [resolvable:$true] %s1183
      %1189 = dma.vmem_to_hbm [thread:$0]  %s1184, 5120, %s2, [#allocation4], 64, 64, 4
    $region21: #{tpu_custom_call.1} parent=1 // pred_fallthru
      _
    // Predicated region
    $region22: #{tpu_custom_call.1} parent=1 // pred_check
      _
    $region23: #{tpu_custom_call.1} parent=1 // pred_check_branch
      %1191 = sbr.rel (0) target = $region25
    $region24: #{tpu_custom_call.1} parent=1 // pred_region
      %1192 = dma.done [#allocation4], 5120
    $region25: #{tpu_custom_call.1} parent=1 // pred_fallthru
      _
    %1193 = vsyncpa [#allocation3], 1
    %1194 = vsyncpa [#allocation6], 1
    %1195 = vsyncpa [#allocation4], 1

</llo_original>
